<compile_context>
chip_gen: v6e
topology: v6e:2x2x1
jax: 0.10.0
libtpu: 0.0.40
codegen_flags: <defaults>
</compile_context>

<pallas_src>
import functools

import jax
import jax.numpy as jnp
from jax import lax
from jax.experimental import pallas as pl
from jax.experimental.pallas import tpu as pltpu


@functools.lru_cache(maxsize=None)
def _vmem_limit_bytes():
    """Per-generation scoped-VMEM limit: 3/4 of physical, capped at 96 MiB."""
    cap = 64 * 1024 * 1024            # conservative fallback (v7x physical VMEM)
    try:
        cap = int(pltpu.get_tpu_info().vmem_capacity_bytes)
    except Exception:
        pass
    return min((cap * 3) // 4, 96 * 1024 * 1024)


# ---------------------------------------------------------------------------
# index / grid_sample(bilinear, align_corners=True, padding_mode='zeros')
# ---------------------------------------------------------------------------
def _index_kernel(feat_hbm, uv_ref, out_ref, feat_vmem, dma_sem, *, H, W):
    # feat_hbm: [B, C, H*W] in HBM (pl.ANY), uv_ref: [2, TN], out_ref: [C, TN]
    # feat_vmem: [C, H*W] single-buffered resident scratch.
    b = pl.program_id(0)
    n = pl.program_id(1)

    # Load this batch's feature map exactly once (single-buffered, resident
    # across all N tiles).  Requires the n axis to be "arbitrary".
    @pl.when(n == 0)
    def _load_feat():
        cp = pltpu.make_async_copy(feat_hbm.at[b], feat_vmem, dma_sem)
        cp.start()
        cp.wait()

    TN = uv_ref.shape[-1]
    f_dt = jnp.dtype(feat_vmem.dtype)
    # Build bilinear weights in the feature dtype when it is 16-bit float
    # (halves VPU traffic / VMEM on v6e+/v7x); keep f32 otherwise.
    # NOTE: bf16 weights deviate slightly from PyTorch's f32 grid_sample.
    w_dt = f_dt if f_dt in (jnp.dtype(jnp.bfloat16), jnp.dtype(jnp.float16)) \
        else jnp.dtype(jnp.float32)

    u = uv_ref[0:1, :].astype(jnp.float32)             # [1, TN] (x -> width)
    v = uv_ref[1:2, :].astype(jnp.float32)             # [1, TN] (y -> height)

    # align_corners=True mapping: [-1, 1] -> [0, dim-1]
    x = (u + 1.0) * (0.5 * (W - 1))
    y = (v + 1.0) * (0.5 * (H - 1))

    x0 = jnp.floor(x)
    fx = x - x0
    y0 = jnp.floor(y)
    fy = y - y0
    x0i = x0.astype(jnp.int32)
    y0i = y0.astype(jnp.int32)

    # One-hot bilinear weights (taps along sublanes, points along lanes).
    # Out-of-range taps never match the iota and thus contribute exactly 0,
    # matching padding_mode='zeros'.
    wi = lax.broadcasted_iota(jnp.int32, (W, TN), 0)
    hi = lax.broadcasted_iota(jnp.int32, (H, TN), 0)
    WxT = (jnp.where(wi == x0i, 1.0 - fx, 0.0)
           + jnp.where(wi == x0i + 1, fx, 0.0)).astype(w_dt)     # [W, TN]
    WyT = (jnp.where(hi == y0i, 1.0 - fy, 0.0)
           + jnp.where(hi == y0i + 1, fy, 0.0)).astype(w_dt)     # [H, TN]

    # Combined weight Wc[(h,w), n] = WyT[h, n] * WxT[w, n]; dtype cast fused
    # into the outer product -- no separate full-size f32 copy of Wc.
    Wc = (WyT[:, None, :] * WxT[None, :, :]).reshape(H * W, TN).astype(f_dt)

    # Single MXU contraction: out[C, TN] = feat[C, H*W] @ Wc[H*W, TN]
    out = jnp.dot(feat_vmem[...], Wc, preferred_element_type=jnp.float32)
    out_ref[...] = out.astype(out_ref.dtype)


@functools.partial(jax.jit, static_argnames=("tile_n",))
def pallas_index(feat, uv, tile_n=256):
    """[B,C,H,W] features sampled at [B,2,N] uv coords -> [B,C,N]."""
    B, C, H, W = feat.shape
    _, two, N = uv.shape
    assert two == 2

    n_tiles = pl.cdiv(N, tile_n)
    n_pad = n_tiles * tile_n
    if n_pad != N:
        # uv is tiny ([B,2,N]); padding it (never feat) is cheap.  Padded
        # columns are sliced off the output below.
        uv = jnp.pad(uv, ((0, 0), (0, 0), (0, n_pad - N)))

    feat_flat = feat.reshape(B, C, H * W)        # lane-dense contraction dim

    itemsize = jnp.dtype(feat.dtype).itemsize
    cost = pl.CostEstimate(
        flops=2 * B * C * H * W * n_pad,
        transcendentals=0,
        bytes_accessed=(feat.size + B * C * n_pad) * itemsize
        + uv.size * jnp.dtype(uv.dtype).itemsize,
    )

    out = pl.pallas_call(
        functools.partial(_index_kernel, H=H, W=W),
        out_shape=jax.ShapeDtypeStruct((B, C, n_pad), feat.dtype),
        grid=(B, n_tiles),
        in_specs=[
            # Whole feature map stays in HBM; the kernel DMAs batch b's
            # [C, H*W] slab into a single-buffered VMEM scratch at n == 0.
            pl.BlockSpec(memory_space=pl.ANY),
            pl.BlockSpec((None, 2, tile_n), lambda b, n: (b, 0, n)),
        ],
        out_specs=pl.BlockSpec((None, C, tile_n), lambda b, n: (b, 0, n)),
        scratch_shapes=[
            pltpu.VMEM((C, H * W), feat.dtype),   # one resident copy, not two
            pltpu.SemaphoreType.DMA,
        ],
        compiler_params=pltpu.CompilerParams(
            # n must be "arbitrary" (sequential): the feat load is gated on
            # n == 0.  b stays "parallel" for megacore sharding.
            dimension_semantics=("parallel", "arbitrary"),
            vmem_limit_bytes=_vmem_limit_bytes(),
        ),
        cost_estimate=cost,
    )(feat_flat, uv)
    return out[:, :, :N]


# ---------------------------------------------------------------------------
# L1 loss (nn.L1Loss(), mean reduction) -- the error_term
# ---------------------------------------------------------------------------
_L1_TILE_R = 256    # sublane rows per block
_L1_TILE_C = 512    # lanes per block (256x512 f32 = 512 KiB per input block)


def _l1_kernel(p_ref, l_ref, out_ref, acc_ref, *, R, C, inv_count):
    r = pl.program_id(0)
    c = pl.program_id(1)
    TR, TC = acc_ref.shape

    @pl.when((r == 0) & (c == 0))
    def _init():
        acc_ref[...] = jnp.zeros_like(acc_ref)

    diff = jnp.abs(p_ref[...].astype(jnp.float32)
                   - l_ref[...].astype(jnp.float32))

    # Mask ragged edge blocks: the padded VMEM region of an edge block is
    # undefined.  These branches are static no-ops when the tiles divide the
    # array exactly.
    if R % TR != 0:
        rows = lax.broadcasted_iota(jnp.int32, (TR, TC), 0)
        diff = jnp.where(rows < R - r * TR, diff, 0.0)
    if C % TC != 0:
        cols = lax.broadcasted_iota(jnp.int32, (TR, TC), 1)
        diff = jnp.where(cols < C - c * TC, diff, 0.0)

    # Keep the inner loop on the VPU: accumulate a block-shaped f32 partial.
    acc_ref[...] += diff

    # Single cross-lane/sublane reduction + scale as a one-time epilogue.
    @pl.when((r == pl.num_programs(0) - 1) & (c == pl.num_programs(1) - 1))
    def _finish():
        out_ref[...] = jnp.zeros_like(out_ref) + jnp.sum(acc_ref[...]) * inv_count


@functools.partial(jax.jit, static_argnames=("tile_r", "tile_c"))
def pallas_l1_loss(preds, labels, tile_r=_L1_TILE_R, tile_c=_L1_TILE_C):
    """mean(|preds - labels|) without padding / copying the inputs."""
    assert preds.shape == labels.shape
    if preds.ndim < 2:
        p2 = preds.reshape(1, -1)
        l2 = labels.reshape(1, -1)
    else:
        # Collapse leading dims ([B, Res, N] -> [B*Res, N]); layout-free.
        p2 = preds.reshape(-1, preds.shape[-1])
        l2 = labels.reshape(-1, labels.shape[-1])
    R, C = p2.shape

    # min() keeps every block shape legal: either a multiple of (8, 128) or
    # the full array extent; ragged edge blocks are masked in-kernel.
    TR = min(tile_r, R)
    TC = min(tile_c, C)
    grid = (pl.cdiv(R, TR), pl.cdiv(C, TC))

    out = pl.pallas_call(
        functools.partial(_l1_kernel, R=R, C=C, inv_count=1.0 / float(R * C)),
        out_shape=jax.ShapeDtypeStruct((1, 1), jnp.float32),
        grid=grid,
        in_specs=[
            pl.BlockSpec((TR, TC), lambda r, c: (r, c)),
            pl.BlockSpec((TR, TC), lambda r, c: (r, c)),
        ],
        out_specs=pl.BlockSpec((1, 1), lambda r, c: (0, 0)),
        scratch_shapes=[pltpu.VMEM((TR, TC), jnp.float32)],
        compiler_params=pltpu.CompilerParams(
            dimension_semantics=("arbitrary", "arbitrary"),
            vmem_limit_bytes=_vmem_limit_bytes(),
        ),
    )(p2, l2)
    return out[0, 0]


# ---------------------------------------------------------------------------
# BasePIFuNet (JAX version).  Abstract base: filter/query are no-ops; forward
# returns self.preds exactly like the PyTorch base class.
# ---------------------------------------------------------------------------
class BasePIFuNet:
    def __init__(self, projection_mode='orthogonal'):
        self.name = 'base'
        self.index = pallas_index          # Pallas grid_sample kernel
        self.error_term = pallas_l1_loss   # Pallas L1 loss kernel
        self.preds = None
        self.labels = None

    def forward(self, data_dict):
        images = data_dict['image']            # [B, C, H, W]
        points = data_dict['sample_points']    # [B, 3, N]
        intrinsic = data_dict['intrinsic']     # [B, 3, 4]
        labels = data_dict['gt_ndf']           # [B, Res, N]
        transforms = None
        self.filter(images)
        self.query(points=points, intrinsic=intrinsic,
                   transforms=transforms, labels=labels)
        return self.get_preds()

    def filter(self, images):
        # Abstract base: no-op (subclasses compute image features).
        return None

    def query(self, points, intrinsic, transforms=None, labels=None):
        # Abstract base: no-op (subclasses produce self.preds).
        return None

    def get_preds(self):
        return self.preds

    def get_error(self):
        return self.error_term(self.preds, self.labels)


# ---------------------------------------------------------------------------
# Pure-JAX reference for the index kernel (grid_sample semantics check)
# ---------------------------------------------------------------------------
def ref_index(feat, uv):
    B, C, H, W = feat.shape

    def per_b(fb, uvb):
        x = (uvb[0] + 1.0) * 0.5 * (W - 1)
        y = (uvb[1] + 1.0) * 0.5 * (H - 1)
        x0 = jnp.floor(x); x1 = x0 + 1.0; fx = x - x0
        y0 = jnp.floor(y); y1 = y0 + 1.0; fy = y - y0

        def tap(ix, iy, w):
            inb = (ix >= 0) & (ix <= W - 1) & (iy >= 0) & (iy <= H - 1)
            ixc = jnp.clip(ix, 0, W - 1).astype(jnp.int32)
            iyc = jnp.clip(iy, 0, H - 1).astype(jnp.int32)
            vals = fb[:, iyc, ixc]                       # [C, N]
            return vals * (w * inb.astype(fb.dtype))[None, :]

        return (tap(x0, y0, (1 - fx) * (1 - fy)) + tap(x1, y0, fx * (1 - fy)) +
                tap(x0, y1, (1 - fx) * fy) + tap(x1, y1, fx * fy))

    return jax.vmap(per_b)(feat, uv)


if __name__ == "__main__":
    key = jax.random.PRNGKey(0)
    B, C, H, W = 2, 4, 16, 16
    N, RES = 8, 4

    k1, k2, k3, k4, k5, k6 = jax.random.split(key, 6)
    image = jax.random.normal(k1, (B, C, H, W), dtype=jnp.float32)
    sample_points = jax.random.normal(k2, (B, 3, N), dtype=jnp.float32)
    intrinsic = jax.random.normal(k3, (B, 3, 4), dtype=jnp.float32)
    gt_ndf = jax.random.uniform(k4, (B, RES, N), dtype=jnp.float32)
    uv = jax.random.uniform(k5, (B, 2, N), minval=-1.0, maxval=1.0,
                            dtype=jnp.float32)

    net = BasePIFuNet()

    # Base-class forward: filter/query are no-ops, preds stay None.
    data_dict = {'image': image, 'sample_points': sample_points,
                 'intrinsic': intrinsic, 'gt_ndf': gt_ndf}
    preds = net.forward(data_dict)
    assert preds is None  # faithful to the abstract base class semantics

    # Hot-path: the `index` (grid_sample) Pallas kernel vs. pure-JAX reference.
    sampled = jax.block_until_ready(net.index(image, uv))     # [B, C, N]
    expected = jax.block_until_ready(ref_index(image, uv))
    assert sampled.shape == (B, C, N)
    assert jnp.allclose(sampled, expected, rtol=1e-5, atol=1e-5), (
        "Pallas index kernel mismatch vs. reference")

    # error_term (L1Loss) Pallas kernel on synthetic preds/labels.
    net.preds = jax.random.uniform(k6, (B, RES, N), dtype=jnp.float32)
    net.labels = gt_ndf
    err = jax.block_until_ready(net.get_error())
    ref_err = jnp.mean(jnp.abs(net.preds - net.labels))
    assert jnp.allclose(err, ref_err, rtol=1e-5, atol=1e-6)

    # Ragged-shape L1 with small tiles: exercises the in-kernel masking of
    # partial edge blocks (no input padding / extra HBM copies).
    a = jax.random.normal(k2, (4, 5, 300), dtype=jnp.float32)
    b = jax.random.normal(k3, (4, 5, 300), dtype=jnp.float32)
    err2 = jax.block_until_ready(pallas_l1_loss(a, b, tile_r=8, tile_c=128))
    ref2 = jnp.mean(jnp.abs(a - b))
    assert jnp.allclose(err2, ref2, rtol=1e-5, atol=1e-6)

    print("KERNEL_OK")
</pallas_src>

<mosaic_0001>
module attributes {stable_mosaic.version = 11 : i64} {
  func.func @_index_kernel(%arg0: i32, %arg1: i32, %arg2: memref<2x4x256xf32, #tpu.memory_space<any>>, %arg3: memref<1x2x256xf32, #tpu.memory_space<vmem>>, %arg4: memref<1x4x256xf32, #tpu.memory_space<vmem>>, %arg5: memref<4x256xf32, #tpu.memory_space<vmem>>, %arg6: memref<!tpu.dma_semaphore, #tpu.memory_space<semaphore_mem>>) attributes {dimension_semantics = [#tpu.dimension_semantics<parallel>, #tpu.dimension_semantics<arbitrary>], iteration_bounds = array<i64: 2, 1>, scalar_prefetch = 0 : i64, scratch_operands = 2 : i64, tpu.core_type = #tpu.core_type<tc>, window_params = [{}, {transform_indices = @transform_1, window_bounds = array<i64: 1, 2, 256>}, {transform_indices = @transform_2, window_bounds = array<i64: 1, 4, 256>}]} {
    %c0_i32 = arith.constant 0 : i32
    %0 = arith.cmpi eq, %arg1, %c0_i32 : i32
    %1 = arith.extui %0 : i1 to i32
    %c0_i32_0 = arith.constant 0 : i32
    %2 = arith.cmpi ne, %1, %c0_i32_0 : i32
    scf.if %2 {
      %c0_i32_21 = arith.constant 0 : i32
      %c0_i32_22 = arith.constant 0 : i32
      %68 = tpu.memref_slice %arg2[%arg0, %c0_i32_21, %c0_i32_22] : memref<2x4x256xf32, #tpu.memory_space<any>> -> memref<1x4x256xf32, #tpu.memory_space<any>>
      %69 = tpu.memref_squeeze %68 : memref<1x4x256xf32, #tpu.memory_space<any>> -> memref<4x256xf32, #tpu.memory_space<any>>
      tpu.enqueue_dma source(%69 : memref<4x256xf32, #tpu.memory_space<any>>) target(%arg5 : memref<4x256xf32, #tpu.memory_space<vmem>>) target_semaphore(%arg6 : memref<!tpu.dma_semaphore, #tpu.memory_space<semaphore_mem>>)
      %c0_i32_23 = arith.constant 0 : i32
      %c0_i32_24 = arith.constant 0 : i32
      %70 = tpu.memref_slice %arg2[%arg0, %c0_i32_23, %c0_i32_24] : memref<2x4x256xf32, #tpu.memory_space<any>> -> memref<1x4x256xf32, #tpu.memory_space<any>>
      %71 = tpu.memref_squeeze %70 : memref<1x4x256xf32, #tpu.memory_space<any>> -> memref<4x256xf32, #tpu.memory_space<any>>
      tpu.wait_dma2 semaphore(%arg6 : memref<!tpu.dma_semaphore, #tpu.memory_space<semaphore_mem>>) src(%71 : memref<4x256xf32, #tpu.memory_space<any>>) dst(%arg5 : memref<4x256xf32, #tpu.memory_space<vmem>>)
    } else {
    }
    %c0 = arith.constant 0 : index
    %c0_1 = arith.constant 0 : index
    %c0_2 = arith.constant 0 : index
    %3 = vector.load %arg3[%c0, %c0_1, %c0_2] : memref<1x2x256xf32, #tpu.memory_space<vmem>>, vector<1x1x256xf32>
    %4 = vector.shape_cast %3 : vector<1x1x256xf32> to vector<1x256xf32>
    %c0_3 = arith.constant 0 : index
    %c1 = arith.constant 1 : index
    %c0_4 = arith.constant 0 : index
    %5 = vector.load %arg3[%c0_3, %c1, %c0_4] : memref<1x2x256xf32, #tpu.memory_space<vmem>>, vector<1x1x256xf32>
    %6 = vector.shape_cast %5 : vector<1x1x256xf32> to vector<1x256xf32>
    %cst = arith.constant 1.000000e+00 : f32
    %7 = vector.broadcast %cst : f32 to vector<1x256xf32>
    %8 = arith.addf %4, %7 : vector<1x256xf32>
    %cst_5 = arith.constant 7.500000e+00 : f32
    %9 = vector.broadcast %cst_5 : f32 to vector<1x256xf32>
    %10 = arith.mulf %8, %9 : vector<1x256xf32>
    %cst_6 = arith.constant 1.000000e+00 : f32
    %11 = vector.broadcast %cst_6 : f32 to vector<1x256xf32>
    %12 = arith.addf %6, %11 : vector<1x256xf32>
    %cst_7 = arith.constant 7.500000e+00 : f32
    %13 = vector.broadcast %cst_7 : f32 to vector<1x256xf32>
    %14 = arith.mulf %12, %13 : vector<1x256xf32>
    %15 = math.floor %10 : vector<1x256xf32>
    %16 = arith.subf %10, %15 : vector<1x256xf32>
    %17 = math.floor %14 : vector<1x256xf32>
    %18 = arith.subf %14, %17 : vector<1x256xf32>
    %19 = arith.fptosi %15 : vector<1x256xf32> to vector<1x256xi32>
    %20 = arith.fptosi %17 : vector<1x256xf32> to vector<1x256xi32>
    %21 = tpu.iota {dimensions = array<i32: 0>} : vector<16x256xi32>
    %22 = tpu.iota {dimensions = array<i32: 0>} : vector<16x256xi32>
    %23 = vector.broadcast %19 : vector<1x256xi32> to vector<16x256xi32>
    %24 = arith.cmpi eq, %21, %23 : vector<16x256xi32>
    %cst_8 = arith.constant 1.000000e+00 : f32
    %25 = vector.broadcast %cst_8 : f32 to vector<1x256xf32>
    %26 = arith.subf %25, %16 : vector<1x256xf32>
    %cst_9 = arith.constant 0.000000e+00 : f32
    %27 = vector.shape_cast %26 : vector<1x256xf32> to vector<1x256xf32>
    %28 = vector.broadcast %27 : vector<1x256xf32> to vector<16x256xf32>
    %29 = vector.broadcast %cst_9 : f32 to vector<16x256xf32>
    %30 = arith.select %24, %28, %29 : vector<16x256xi1>, vector<16x256xf32>
    %c1_i32 = arith.constant 1 : i32
    %31 = vector.broadcast %c1_i32 : i32 to vector<1x256xi32>
    %32 = arith.addi %19, %31 : vector<1x256xi32>
    %33 = vector.broadcast %32 : vector<1x256xi32> to vector<16x256xi32>
    %34 = arith.cmpi eq, %21, %33 : vector<16x256xi32>
    %cst_10 = arith.constant 0.000000e+00 : f32
    %35 = vector.shape_cast %16 : vector<1x256xf32> to vector<1x256xf32>
    %36 = vector.broadcast %35 : vector<1x256xf32> to vector<16x256xf32>
    %37 = vector.broadcast %cst_10 : f32 to vector<16x256xf32>
    %38 = arith.select %34, %36, %37 : vector<16x256xi1>, vector<16x256xf32>
    %39 = arith.addf %30, %38 : vector<16x256xf32>
    %40 = vector.broadcast %20 : vector<1x256xi32> to vector<16x256xi32>
    %41 = arith.cmpi eq, %22, %40 : vector<16x256xi32>
    %cst_11 = arith.constant 1.000000e+00 : f32
    %42 = vector.broadcast %cst_11 : f32 to vector<1x256xf32>
    %43 = arith.subf %42, %18 : vector<1x256xf32>
    %cst_12 = arith.constant 0.000000e+00 : f32
    %44 = vector.shape_cast %43 : vector<1x256xf32> to vector<1x256xf32>
    %45 = vector.broadcast %44 : vector<1x256xf32> to vector<16x256xf32>
    %46 = vector.broadcast %cst_12 : f32 to vector<16x256xf32>
    %47 = arith.select %41, %45, %46 : vector<16x256xi1>, vector<16x256xf32>
    %c1_i32_13 = arith.constant 1 : i32
    %48 = vector.broadcast %c1_i32_13 : i32 to vector<1x256xi32>
    %49 = arith.addi %20, %48 : vector<1x256xi32>
    %50 = vector.broadcast %49 : vector<1x256xi32> to vector<16x256xi32>
    %51 = arith.cmpi eq, %22, %50 : vector<16x256xi32>
    %cst_14 = arith.constant 0.000000e+00 : f32
    %52 = vector.shape_cast %18 : vector<1x256xf32> to vector<1x256xf32>
    %53 = vector.broadcast %52 : vector<1x256xf32> to vector<16x256xf32>
    %54 = vector.broadcast %cst_14 : f32 to vector<16x256xf32>
    %55 = arith.select %51, %53, %54 : vector<16x256xi1>, vector<16x256xf32>
    %56 = arith.addf %47, %55 : vector<16x256xf32>
    %57 = vector.shape_cast %56 : vector<16x256xf32> to vector<16x1x256xf32>
    %58 = vector.shape_cast %39 : vector<16x256xf32> to vector<1x16x256xf32>
    %59 = vector.broadcast %57 : vector<16x1x256xf32> to vector<16x16x256xf32>
    %60 = vector.broadcast %58 : vector<1x16x256xf32> to vector<16x16x256xf32>
    %61 = arith.mulf %59, %60 : vector<16x16x256xf32>
    %62 = vector.shape_cast %61 : vector<16x16x256xf32> to vector<256x256xf32>
    %c0_15 = arith.constant 0 : index
    %c0_16 = arith.constant 0 : index
    %63 = vector.load %arg5[%c0_15, %c0_16] : memref<4x256xf32, #tpu.memory_space<vmem>>, vector<4x256xf32>
    %cst_17 = arith.constant dense<0.000000e+00> : vector<4x256xf32>
    %64 = tpu.matmul %63, %62, %cst_17 {dimension_numbers = #tpu.dot_dimension_numbers<[1], [0], [0], [1], [0, 0, 1, 1], [], []>} : vector<4x256xf32>, vector<256x256xf32>, vector<4x256xf32> -> vector<4x256xf32>
    %c0_18 = arith.constant 0 : index
    %c0_19 = arith.constant 0 : index
    %c0_20 = arith.constant 0 : index
    %65 = vector.load %arg4[%c0_18, %c0_19, %c0_20] : memref<1x4x256xf32, #tpu.memory_space<vmem>>, vector<1x4x256xf32>
    %66 = vector.shape_cast %65 : vector<1x4x256xf32> to vector<4x256xf32>
    %67 = vector.shape_cast %64 : vector<4x256xf32> to vector<1x4x256xf32>
    tpu.vector_store %arg4[%c0_18, %c0_19, %c0_20], %67 {strides = array<i32>} : memref<1x4x256xf32, #tpu.memory_space<vmem>>, vector<1x4x256xf32>,
    return
  }
  func.func @transform_1(%arg0: i32, %arg1: i32) -> (i32, i32, i32) {
    %c0_i32 = arith.constant 0 : i32
    %c0_i32_0 = arith.constant 0 : i32
    return %arg0, %c0_i32, %arg1 : i32, i32, i32
  }
  func.func @transform_2(%arg0: i32, %arg1: i32) -> (i32, i32, i32) {
    %c0_i32 = arith.constant 0 : i32
    %c0_i32_0 = arith.constant 0 : i32
    return %arg0, %c0_i32, %arg1 : i32, i32, i32
  }
}

</mosaic_0001>

<llo_original>
// kernel: pallas_index.1
$region0: #{pallas_index.1}
  #allocation0 [shape = 'u32[]', space=smem, size = 0x4, offset = 0x4, fixed_abs, tag = 'smem constant byte address 0x4 - core index']
  #allocation1 [shape = 'u32[144,128]{1,0:T(1,128)}', space=vmem, size = 0x12000, scoped, tag = 'internal scratch']
  #allocation2 [shape = 'f32[4,256]{1,0:T(4,128)}', space=vmem, size = 0x1000, scoped, tag = 'scratch operand']
  #allocation3 [shape = 's32[1]{0}', space=sflag, size = 0x4, scoped, tag = 'scratch operand']
  #allocation4 [shape = 's32[]', space=sflag, size = 0x4, offset = 0, fixed_abs, tag = 'sflag constant byte address 0x0 - dummy sync flag']
  %s0 = inlined_call_operand.vmem [shape: f32[2,4,256], index: 0, kind: input, shape index: {}]
  %s1 = inlined_call_operand.vmem [shape: f32[2,2,256], index: 1, kind: input, shape index: {}]
  %s2 = inlined_call_operand.vmem [shape: f32[2,4,256], index: 2, kind: output, shape index: {}]
  %s3 = sld [smem:[#allocation0]]
  $region75: #{pallas_index.1} parent=0
    _
  %s5 = ssub.s32 1, %s3
  %s6 = scalar_select 0, %s5, %s3
  loop: start=0, step=1, limit=4
  $region2: #{pallas_index.1} parent=0 // loop_pre_header
    _
  $region3: #{pallas_index.1} parent=0 // loop_header
    %s8 = sphi 0, %s12
    %p9 = scmp.ge.s32.totalorder %s8, 4
    %s15 = sphi 0, %s27
    %s16 = sphi 0, %s23
    %s17 = sphi 0, %s15
    %s18 = sphi 0, %s16
    %s19 = sphi 0, %s17
    %s20 = sphi 0, %s18
    %s32 = sphi 0, %s34
    %s35 = sphi 0, %s32
    %s36 = sphi 0, %s35
    %s52 = sphi 0, %s36
    %s60 = sphi 0, %s62
    %s63 = sphi 0, %s60
    %s64 = sphi 0, %s63
    %s80 = sphi 0, %s64
  $region4: #{pallas_index.1} parent=0 // loop_header_branch
    %11 = sbr.rel (%p9) target = $region8
  $region5: #{pallas_index.1} parent=0 // loop_body
    %s13 = ssub.s32 %s8, 1
    %s14 = ssub.s32 %s8, 2
    %s21 = sadd.s32 1, %s16
    %p22 = scmp.ge.s32.totalorder %s21, 1
    %s23 = scalar_select %p22, 0, %s21
    %s24 = sadd.s32 1, %s15
    %s25 = scalar_select %p22, %s24, %s15
    %p26 = scmp.ge.s32.totalorder %s25, 2
    %s27 = scalar_select %p26, 0, %s25
    %s28 = ssub.s32 %s15, %s27
    %s29 = ssub.s32 %s16, %s23
    %s30 = sor.u32 %s28, %s29
    %p31 = scmp.eq.s32.totalorder %s30, 0
    %s33 = sadd.s32 %s32, 1
    %s34 = scalar_select %p31, %s32, %s33
    %p37 = pneg %p31
    %p38 = scmp.eq.s32.totalorder %s8, 1
    %p39 = por %p37, %p38
    %p40 = scmp.ne.s32.totalorder %s32, %s35
    %p41 = scmp.eq.s32.totalorder %s8, 0
    %p42 = por %p40, %p41
    %p43 = scmp.ne.s32.totalorder %s32, %s35
    %p44 = scmp.eq.s32.totalorder %s13, 1
    %p45 = por %p43, %p44
    %p46 = scmp.ne.s32.totalorder %s35, %s36
    %p47 = scmp.eq.s32.totalorder %s13, 0
    %p48 = por %p46, %p47
    %p49 = scmp.ne.s32.totalorder %s35, %s36
    %p50 = scmp.eq.s32.totalorder %s14, 1
    %p51 = por %p49, %p50
    %p53 = scmp.ne.s32.totalorder %s36, %s52
    %p54 = scmp.eq.s32.totalorder %s14, 0
    %p55 = por %p53, %p54
    %s56 = ssub.s32 %s15, %s27
    %s57 = ssub.s32 %s16, %s23
    %s58 = sor.u32 %s56, %s57
    %p59 = scmp.eq.s32.totalorder %s58, 0
    %s61 = sadd.s32 %s60, 1
    %s62 = scalar_select %p59, %s60, %s61
    %p65 = pneg %p59
    %p66 = scmp.eq.s32.totalorder %s8, 1
    %p67 = por %p65, %p66
    %p68 = scmp.ne.s32.totalorder %s60, %s63
    %p69 = scmp.eq.s32.totalorder %s8, 0
    %p70 = por %p68, %p69
    %p71 = scmp.ne.s32.totalorder %s60, %s63
    %p72 = scmp.eq.s32.totalorder %s13, 1
    %p73 = por %p71, %p72
    %p74 = scmp.ne.s32.totalorder %s63, %s64
    %p75 = scmp.eq.s32.totalorder %s13, 0
    %p76 = por %p74, %p75
    %p77 = scmp.ne.s32.totalorder %s63, %s64
    %p78 = scmp.eq.s32.totalorder %s14, 1
    %p79 = por %p77, %p78
    %p81 = scmp.ne.s32.totalorder %s64, %s80
    %p82 = scmp.eq.s32.totalorder %s14, 0
    %p83 = por %p81, %p82
    %p84 = scmp.le.s32.totalorder 1, %s8
    %p85 = scmp.lt.s32.totalorder %s8, 3
    %p86 = pnand %p84, %p85
    %p87 = pneg %p86
    // Predicated region
    $region9: #{pallas_index.1} parent=5 // pred_check
      _
    $region10: #{pallas_index.1} parent=5 // pred_check_branch
      %89 = sbr.rel (%p86) target = $region12
    $region11: #{pallas_index.1} parent=5 // pred_region
      %s90 = ssub.s32 %s8, 1
    $region12: #{pallas_index.1} parent=5 // pred_fallthru
      _
    %p91 = scmp.lt.s32.totalorder %s8, 2
    // Predicated region
    $region13: #{pallas_index.1} parent=5 // pred_check
      %p92 = pneg %p91
    $region14: #{pallas_index.1} parent=5 // pred_check_branch
      %94 = sbr.rel (%p92) target = $region16
    $region15: #{pallas_index.1} parent=5 // pred_region
      // Predicated region
      $region17: #{pallas_index.1} parent=15 // pred_check
        %p95 = pneg %p42
      $region18: #{pallas_index.1} parent=15 // pred_check_branch
        %97 = sbr.rel (%p95) target = $region20
      $region19: #{pallas_index.1} parent=15 // pred_region
        %s98 = smul.u32 2, %s16
        %p99 = scmp.lt.s32.totalorder %s15, 1
        %s100 = scalar_select %p99, %s15, 1
        %p101 = scmp.lt.s32.totalorder %s98, 1
        %s102 = scalar_select %p101, %s98, 1
        %s103 = smul.addr %s100, 2
        %s104 = sadd.s32 %s102, %s103
        %s105 = smul.addr %s104, 2
        %s106 = scalar_lea.vmem %s1, %s105
        %s107 = smul.u32 2, %s16
      $region20: #{pallas_index.1} parent=15 // pred_fallthru
        _
    $region16: #{pallas_index.1} parent=5 // pred_fallthru
      _
    %p108 = scmp.le.s32.totalorder 1, %s8
    %p109 = scmp.lt.s32.totalorder %s8, 3
    %p110 = pnand %p108, %p109
    %p111 = pneg %p110
    // Predicated region
    $region21: #{pallas_index.1} parent=5 // pred_check
      _
    $region22: #{pallas_index.1} parent=5 // pred_check_branch
      %113 = sbr.rel (%p110) target = $region24
    $region23: #{pallas_index.1} parent=5 // pred_region
      %s114 = ssub.s32 %s8, 1
      %s115 = smul.u32 2, %s18
      %p116 = scmp.lt.s32.totalorder %s17, 1
      %s117 = scalar_select %p116, %s17, 1
      %p118 = scmp.lt.s32.totalorder %s115, 1
      %s119 = scalar_select %p118, %s115, 1
      %s120 = smul.addr %s117, 2
      %s121 = sadd.s32 %s119, %s120
      %s122 = smul.addr %s121, 2
      %s123 = scalar_lea.vmem %s1, %s122
      %p124 = pneg %p48
      %p125 = pneg %p45
      %p126 = pneg %p76
      %p127 = pneg %p73
      %s128 = smul.u32 2, %s18
      %p129 = scmp.lt.s32.totalorder %s17, 1
      %s130 = scalar_select %p129, %s17, 1
      %p131 = scmp.lt.s32.totalorder %s128, 1
      %s132 = scalar_select %p131, %s128, 1
      %s133 = smul.addr %s130, 2
      %s134 = sadd.s32 %s132, %s133
      %s135 = smul.addr %s134, 4
      %s136 = scalar_lea.vmem %s2, %s135
      %s137 = smul.u32 2, %s18
      %p138 = scmp.lt.s32.totalorder %s17, 1
      %s139 = scalar_select %p138, %s17, 1
      %p140 = scmp.lt.s32.totalorder %s137, 1
      %s141 = scalar_select %p140, %s137, 1
      %s142 = smul.addr %s139, 2
      %s143 = sadd.s32 %s141, %s142
      %s144 = smul.addr %s143, 2
      %s145 = scalar_lea.vmem %s1, %s144
      %s146 = smul.u32 2, %s18
      %s147 = smul.u32 2, %s18
      %p148 = scmp.lt.s32.totalorder %s17, 1
      %s149 = scalar_select %p148, %s17, 1
      %p150 = scmp.lt.s32.totalorder %s147, 1
      %s151 = scalar_select %p150, %s147, 1
      %s152 = smul.addr %s149, 2
      %s153 = sadd.s32 %s151, %s152
      %s154 = smul.addr %s153, 4
      %s155 = scalar_lea.vmem %s2, %s154
      %s156 = smul.u32 2, %s18
      %p157 = scmp.eq.s32.totalorder %s18, 0
      // Predicated region
      $region25: #{pallas_index.1} parent=23 // pred_check
        %p158 = pneg %p157
      $region26: #{pallas_index.1} parent=23 // pred_check_branch
        %160 = sbr.rel (%p158) target = $region28
      $region27: #{pallas_index.1} parent=23 // pred_region
        %s161 = smul.u32 %s17, 2
        %s162 = smul.addr %s161, 4
        %s163 = scalar_lea.vmem %s0, %s162
        %p165 = scmp.lt.u32.totalorder 8, 8
        %p166 = pneg %p165
        // Predicated region
        $region29: #{pallas_index.1} parent=27 // pred_check
          _
        $region30: #{pallas_index.1} parent=27 // pred_check_branch
          %168 = sbr.rel (%p165) target = $region32
        $region31: #{pallas_index.1} parent=27 // pred_region
          %s184 = sand.u32 8, 7
          %p185 = scmp.eq.s32.totalorder %s184, 0
          // Predicated region
          $region44: #{pallas_index.1} parent=31 // pred_check
            %p186 = pneg %p185
          $region45: #{pallas_index.1} parent=31 // pred_check_branch
            %188 = sbr.rel (%p186) target = $region47
          $region46: #{pallas_index.1} parent=31 // pred_region
            loop: start=0, step=1, limit=1
            $region48: #{pallas_index.1} parent=46 // loop_pre_header
              _
            $region49: #{pallas_index.1} parent=46 // loop_header
              %s190 = sphi 0, %s194
              %p191 = scmp.ge.s32.totalorder %s190, 1
              %s195 = sphi %s163, %s163
              %s196 = sphi [#allocation2], [#allocation2]
            $region50: #{pallas_index.1} parent=46 // loop_header_branch
              %193 = sbr.rel (%p191) target = $region54
            $region51: #{pallas_index.1} parent=46 // loop_body
              %v197 = vld [vmem:[%s195] sm:$0xff]
              %198 = vst [vmem:[%s196] sm:$0xff] %v197
            $region52: #{pallas_index.1} parent=46 // loop_footer
              %s194 = sadd.s32 1, %s190
            $region53: #{pallas_index.1} parent=46 // loop_footer_branch
              %189 = sbr.rel target = $region49
            $region54: #{pallas_index.1} parent=46 // loop_exit
              _
          $region47: #{pallas_index.1} parent=31 // pred_fallthru
            _
          %p199 = pneg %p185
          // Predicated region
          $region55: #{pallas_index.1} parent=31 // pred_check
            _
          $region56: #{pallas_index.1} parent=31 // pred_check_branch
            %201 = sbr.rel (%p185) target = $region58
          $region57: #{pallas_index.1} parent=31 // pred_region
            %s202 = sand.u32 8, 7
          $region58: #{pallas_index.1} parent=31 // pred_fallthru
            _
        $region32: #{pallas_index.1} parent=27 // pred_fallthru
          _
        // Predicated region
        $region33: #{pallas_index.1} parent=27 // pred_check
          %p169 = pneg %p165
        $region34: #{pallas_index.1} parent=27 // pred_check_branch
          %171 = sbr.rel (%p169) target = $region36
        $region35: #{pallas_index.1} parent=27 // pred_region
          %s172 = sshll.u32 1, 8
          %s173 = ssub.s32 %s172, 1
          loop: start=0, step=1, limit=1
          $region37: #{pallas_index.1} parent=35 // loop_pre_header
            _
          $region38: #{pallas_index.1} parent=35 // loop_header
            %s175 = sphi 0, %s179
            %p176 = scmp.ge.s32.totalorder %s175, 1
            %s180 = sphi %s163, %s163
            %s181 = sphi [#allocation2], [#allocation2]
          $region39: #{pallas_index.1} parent=35 // loop_header_branch
            %178 = sbr.rel (%p176) target = $region43
          $region40: #{pallas_index.1} parent=35 // loop_body
            %v182 = vld [vmem:[%s180] sm:%s173]
            %183 = vst [vmem:[%s181] sm:%s173] %v182
          $region41: #{pallas_index.1} parent=35 // loop_footer
            %s179 = sadd.s32 1, %s175
          $region42: #{pallas_index.1} parent=35 // loop_footer_branch
            %174 = sbr.rel target = $region38
          $region43: #{pallas_index.1} parent=35 // loop_exit
            _
        $region36: #{pallas_index.1} parent=27 // pred_fallthru
          _
        // Predicated region
        $region59: #{pallas_index.1} parent=27 // pred_check
          _
        $region60: #{pallas_index.1} parent=27 // pred_check_branch
          %205 = sbr.rel (0) target = $region62
        $region61: #{pallas_index.1} parent=27 // pred_region
          %206 = vsyncadd [#allocation3], 128
        $region62: #{pallas_index.1} parent=27 // pred_fallthru
          _
        %s207 = smul.u32 4, 1
        %s208 = smul.u32 %s207, 2
        %s209 = sshll.u32 %s208, 4
        %210 = dma.done [#allocation3], %s209
      $region28: #{pallas_index.1} parent=23 // pred_fallthru
        _
      %v211 = vld [vmem:[%s145] ss:$2 sm:$0x3]
      %s212 = scalar_lea.vmem %s145, 1
      %v213 = vld [vmem:[%s212] ss:$2 sm:$0x3]
      %v214 = vadd.f32 %v211, 1.0
      %v215 = vmul.f32 %v214, 7.5
      %v216 = vadd.f32 %v213, 1.0
      %v217 = vmul.f32 %v216, 7.5
      %v218 = vfloor.f32 %v215
      %v219 = vsub.f32 %v215, %v218
      %v220 = vfloor.f32 %v217
      %v221 = vsub.f32 %v217, %v220
      %v222 = vcvt.f32.s32.to.zero.pseudo %v218
      %v223 = vcvt.f32.s32.to.zero.pseudo %v220
      %v224 = vlaneseq
      %v225 = vshrl.u32 %v224, 7
      %v226 = vadd.s32 %v225, 8
      %v227 = vlaneseq
      %v228 = vshrl.u32 %v227, 7
      %v229 = vsub.s32 0, %v228
      %v230 = vrot.slane %v222, %v229
      %v231 = vlaneseq
      %v232 = vshrl.u32 %v231, 7
      %v233 = vsub.s32 1, %v232
      %v234 = vrot.slane %v222, %v233
      %vm235 = vcmp.eq.s32.totalorder %v225, %v230
      %vm236 = vcmp.eq.s32.totalorder %v225, %v234
      %vm237 = vcmp.eq.s32.totalorder %v226, %v230
      %vm238 = vcmp.eq.s32.totalorder %v226, %v234
      %v239 = vsub.f32 1.0, %v219
      %v241 = vlaneseq
      %v242 = vshrl.u32 %v241, 7
      %v243 = vsub.s32 0, %v242
      %v244 = vrot.slane %v239, %v243
      %v245 = vlaneseq
      %v246 = vshrl.u32 %v245, 7
      %v247 = vsub.s32 1, %v246
      %v248 = vrot.slane %v239, %v247
      %v251 = vsel %vm235, %v244, 0.0
      %v252 = vsel %vm236, %v248, 0.0
      %v253 = vsel %vm237, %v244, 0.0
      %v254 = vsel %vm238, %v248, 0.0
      %v255 = vadd.s32 %v222, 1
      %v256 = vlaneseq
      %v257 = vshrl.u32 %v256, 7
      %v258 = vsub.s32 0, %v257
      %v259 = vrot.slane %v255, %v258
      %v260 = vlaneseq
      %v261 = vshrl.u32 %v260, 7
      %v262 = vsub.s32 1, %v261
      %v263 = vrot.slane %v255, %v262
      %vm264 = vcmp.eq.s32.totalorder %v225, %v259
      %vm265 = vcmp.eq.s32.totalorder %v225, %v263
      %vm266 = vcmp.eq.s32.totalorder %v226, %v259
      %vm267 = vcmp.eq.s32.totalorder %v226, %v263
      %v269 = vlaneseq
      %v270 = vshrl.u32 %v269, 7
      %v271 = vsub.s32 0, %v270
      %v272 = vrot.slane %v219, %v271
      %v273 = vlaneseq
      %v274 = vshrl.u32 %v273, 7
      %v275 = vsub.s32 1, %v274
      %v276 = vrot.slane %v219, %v275
      %v279 = vsel %vm264, %v272, 0.0
      %v280 = vsel %vm265, %v276, 0.0
      %v281 = vsel %vm266, %v272, 0.0
      %v282 = vsel %vm267, %v276, 0.0
      %v283 = vadd.f32 %v251, %v279
      %v284 = vadd.f32 %v252, %v280
      %v285 = vadd.f32 %v253, %v281
      %v286 = vadd.f32 %v254, %v282
      %v287 = vlaneseq
      %v288 = vshrl.u32 %v287, 7
      %v289 = vsub.s32 0, %v288
      %v290 = vrot.slane %v223, %v289
      %v291 = vlaneseq
      %v292 = vshrl.u32 %v291, 7
      %v293 = vsub.s32 1, %v292
      %v294 = vrot.slane %v223, %v293
      %vm295 = vcmp.eq.s32.totalorder %v225, %v290
      %vm296 = vcmp.eq.s32.totalorder %v225, %v294
      %vm297 = vcmp.eq.s32.totalorder %v226, %v290
      %vm298 = vcmp.eq.s32.totalorder %v226, %v294
      %v299 = vsub.f32 1.0, %v221
      %v301 = vlaneseq
      %v302 = vshrl.u32 %v301, 7
      %v303 = vsub.s32 0, %v302
      %v304 = vrot.slane %v299, %v303
      %v305 = vlaneseq
      %v306 = vshrl.u32 %v305, 7
      %v307 = vsub.s32 1, %v306
      %v308 = vrot.slane %v299, %v307
      %v311 = vsel %vm295, %v304, 0.0
      %v312 = vsel %vm296, %v308, 0.0
      %v313 = vsel %vm297, %v304, 0.0
      %v314 = vsel %vm298, %v308, 0.0
      %v315 = vadd.s32 %v223, 1
      %v316 = vlaneseq
      %v317 = vshrl.u32 %v316, 7
      %v318 = vsub.s32 0, %v317
      %v319 = vrot.slane %v315, %v318
      %v320 = vlaneseq
      %v321 = vshrl.u32 %v320, 7
      %v322 = vsub.s32 1, %v321
      %v323 = vrot.slane %v315, %v322
      %vm324 = vcmp.eq.s32.totalorder %v225, %v319
      %vm325 = vcmp.eq.s32.totalorder %v225, %v323
      %vm326 = vcmp.eq.s32.totalorder %v226, %v319
      %vm327 = vcmp.eq.s32.totalorder %v226, %v323
      %v329 = vlaneseq
      %v330 = vshrl.u32 %v329, 7
      %v331 = vsub.s32 0, %v330
      %v332 = vrot.slane %v221, %v331
      %v333 = vlaneseq
      %v334 = vshrl.u32 %v333, 7
      %v335 = vsub.s32 1, %v334
      %v336 = vrot.slane %v221, %v335
      %v339 = vsel %vm324, %v332, 0.0
      %v340 = vsel %vm325, %v336, 0.0
      %v341 = vsel %vm326, %v332, 0.0
      %v342 = vsel %vm327, %v336, 0.0
      %v343 = vadd.f32 %v311, %v339
      %v344 = vadd.f32 %v312, %v340
      %v345 = vadd.f32 %v313, %v341
      %v346 = vadd.f32 %v314, %v342
      %v351 = vcombine.low %v343, %v344
      %v352 = vcombine.high %v343, %v344
      %v354 = vunpack.c.l.s4 1966171168
      %v355 = vunpack.c.0.s8 %v354
      %v356 = vlaneseq
      %v357 = vshrl.u32 %v356, 7
      %v358 = vsub.s32 %v355, %v357
      %v359 = vrot.slane %v351, %v358
      %v361 = vunpack.c.l.s4 1966171168
      %v362 = vunpack.c.0.s8 %v361
      %v363 = vlaneseq
      %v364 = vshrl.u32 %v363, 7
      %v365 = vsub.s32 %v362, %v364
      %v366 = vrot.slane %v352, %v365
      %v367 = vcombine.high %v359, %v359
      %v368 = vcombine.high %v366, %v366
      %v370 = vunpack.c.l.s4 1966171168
      %v371 = vunpack.c.0.s8 %v370
      %v372 = vlaneseq
      %v373 = vshrl.u32 %v372, 7
      %v374 = vsub.s32 %v371, %v373
      %v375 = vrot.slane %v359, %v374
      %v377 = vunpack.c.l.s4 1966171168
      %v378 = vunpack.c.0.s8 %v377
      %v379 = vlaneseq
      %v380 = vshrl.u32 %v379, 7
      %v381 = vsub.s32 %v378, %v380
      %v382 = vrot.slane %v366, %v381
      %v384 = vunpack.c.l.s4 1966171168
      %v385 = vunpack.c.0.s8 %v384
      %v386 = vlaneseq
      %v387 = vshrl.u32 %v386, 7
      %v388 = vsub.s32 %v385, %v387
      %v389 = vrot.slane %v367, %v388
      %v391 = vunpack.c.l.s4 1966171168
      %v392 = vunpack.c.0.s8 %v391
      %v393 = vlaneseq
      %v394 = vshrl.u32 %v393, 7
      %v395 = vsub.s32 %v392, %v394
      %v396 = vrot.slane %v368, %v395
      %v397 = vcombine.high %v375, %v375
      %v398 = vcombine.high %v382, %v382
      %v399 = vcombine.high %v389, %v389
      %v400 = vcombine.high %v396, %v396
      %v401 = vcombine.low %v345, %v346
      %v402 = vcombine.high %v345, %v346
      %v404 = vunpack.c.l.s4 1966171168
      %v405 = vunpack.c.0.s8 %v404
      %v406 = vlaneseq
      %v407 = vshrl.u32 %v406, 7
      %v408 = vsub.s32 %v405, %v407
      %v409 = vrot.slane %v401, %v408
      %v411 = vunpack.c.l.s4 1966171168
      %v412 = vunpack.c.0.s8 %v411
      %v413 = vlaneseq
      %v414 = vshrl.u32 %v413, 7
      %v415 = vsub.s32 %v412, %v414
      %v416 = vrot.slane %v402, %v415
      %v417 = vcombine.high %v409, %v409
      %v418 = vcombine.high %v416, %v416
      %v420 = vunpack.c.l.s4 1966171168
      %v421 = vunpack.c.0.s8 %v420
      %v422 = vlaneseq
      %v423 = vshrl.u32 %v422, 7
      %v424 = vsub.s32 %v421, %v423
      %v425 = vrot.slane %v409, %v424
      %v427 = vunpack.c.l.s4 1966171168
      %v428 = vunpack.c.0.s8 %v427
      %v429 = vlaneseq
      %v430 = vshrl.u32 %v429, 7
      %v431 = vsub.s32 %v428, %v430
      %v432 = vrot.slane %v416, %v431
      %v434 = vunpack.c.l.s4 1966171168
      %v435 = vunpack.c.0.s8 %v434
      %v436 = vlaneseq
      %v437 = vshrl.u32 %v436, 7
      %v438 = vsub.s32 %v435, %v437
      %v439 = vrot.slane %v417, %v438
      %v441 = vunpack.c.l.s4 1966171168
      %v442 = vunpack.c.0.s8 %v441
      %v443 = vlaneseq
      %v444 = vshrl.u32 %v443, 7
      %v445 = vsub.s32 %v442, %v444
      %v446 = vrot.slane %v418, %v445
      %v447 = vcombine.high %v425, %v425
      %v448 = vcombine.high %v432, %v432
      %v449 = vcombine.high %v439, %v439
      %v450 = vcombine.high %v446, %v446
      %v451 = vlaneseq
      %v452 = vshrl.u32 %v451, 7
      %v453 = vsub.s32 0, %v452
      %v454 = vrot.slane %v375, %v453
      %v455 = vlaneseq
      %v456 = vshrl.u32 %v455, 7
      %v457 = vsub.s32 1, %v456
      %v458 = vrot.slane %v375, %v457
      %v459 = vlaneseq
      %v460 = vshrl.u32 %v459, 7
      %v461 = vsub.s32 0, %v460
      %v462 = vrot.slane %v389, %v461
      %v463 = vlaneseq
      %v464 = vshrl.u32 %v463, 7
      %v465 = vsub.s32 1, %v464
      %v466 = vrot.slane %v389, %v465
      %v467 = vlaneseq
      %v468 = vshrl.u32 %v467, 7
      %v469 = vsub.s32 0, %v468
      %v470 = vrot.slane %v397, %v469
      %v471 = vlaneseq
      %v472 = vshrl.u32 %v471, 7
      %v473 = vsub.s32 1, %v472
      %v474 = vrot.slane %v397, %v473
      %v475 = vlaneseq
      %v476 = vshrl.u32 %v475, 7
      %v477 = vsub.s32 0, %v476
      %v478 = vrot.slane %v399, %v477
      %v479 = vlaneseq
      %v480 = vshrl.u32 %v479, 7
      %v481 = vsub.s32 1, %v480
      %v482 = vrot.slane %v399, %v481
      %v483 = vlaneseq
      %v484 = vshrl.u32 %v483, 7
      %v485 = vsub.s32 0, %v484
      %v486 = vrot.slane %v382, %v485
      %v487 = vlaneseq
      %v488 = vshrl.u32 %v487, 7
      %v489 = vsub.s32 1, %v488
      %v490 = vrot.slane %v382, %v489
      %v491 = vlaneseq
      %v492 = vshrl.u32 %v491, 7
      %v493 = vsub.s32 0, %v492
      %v494 = vrot.slane %v396, %v493
      %v495 = vlaneseq
      %v496 = vshrl.u32 %v495, 7
      %v497 = vsub.s32 1, %v496
      %v498 = vrot.slane %v396, %v497
      %v499 = vlaneseq
      %v500 = vshrl.u32 %v499, 7
      %v501 = vsub.s32 0, %v500
      %v502 = vrot.slane %v398, %v501
      %v503 = vlaneseq
      %v504 = vshrl.u32 %v503, 7
      %v505 = vsub.s32 1, %v504
      %v506 = vrot.slane %v398, %v505
      %v507 = vlaneseq
      %v508 = vshrl.u32 %v507, 7
      %v509 = vsub.s32 0, %v508
      %v510 = vrot.slane %v400, %v509
      %v511 = vlaneseq
      %v512 = vshrl.u32 %v511, 7
      %v513 = vsub.s32 1, %v512
      %v514 = vrot.slane %v400, %v513
      %v515 = vlaneseq
      %v516 = vshrl.u32 %v515, 7
      %v517 = vsub.s32 0, %v516
      %v518 = vrot.slane %v425, %v517
      %v519 = vlaneseq
      %v520 = vshrl.u32 %v519, 7
      %v521 = vsub.s32 1, %v520
      %v522 = vrot.slane %v425, %v521
      %v523 = vlaneseq
      %v524 = vshrl.u32 %v523, 7
      %v525 = vsub.s32 0, %v524
      %v526 = vrot.slane %v439, %v525
      %v527 = vlaneseq
      %v528 = vshrl.u32 %v527, 7
      %v529 = vsub.s32 1, %v528
      %v530 = vrot.slane %v439, %v529
      %v531 = vlaneseq
      %v532 = vshrl.u32 %v531, 7
      %v533 = vsub.s32 0, %v532
      %v534 = vrot.slane %v447, %v533
      %v535 = vlaneseq
      %v536 = vshrl.u32 %v535, 7
      %v537 = vsub.s32 1, %v536
      %v538 = vrot.slane %v447, %v537
      %v539 = vlaneseq
      %v540 = vshrl.u32 %v539, 7
      %v541 = vsub.s32 0, %v540
      %v542 = vrot.slane %v449, %v541
      %v543 = vlaneseq
      %v544 = vshrl.u32 %v543, 7
      %v545 = vsub.s32 1, %v544
      %v546 = vrot.slane %v449, %v545
      %v547 = vlaneseq
      %v548 = vshrl.u32 %v547, 7
      %v549 = vsub.s32 0, %v548
      %v550 = vrot.slane %v432, %v549
      %v551 = vlaneseq
      %v552 = vshrl.u32 %v551, 7
      %v553 = vsub.s32 1, %v552
      %v554 = vrot.slane %v432, %v553
      %v555 = vlaneseq
      %v556 = vshrl.u32 %v555, 7
      %v557 = vsub.s32 0, %v556
      %v558 = vrot.slane %v446, %v557
      %v559 = vlaneseq
      %v560 = vshrl.u32 %v559, 7
      %v561 = vsub.s32 1, %v560
      %v562 = vrot.slane %v446, %v561
      %v563 = vlaneseq
      %v564 = vshrl.u32 %v563, 7
      %v565 = vsub.s32 0, %v564
      %v566 = vrot.slane %v448, %v565
      %v567 = vlaneseq
      %v568 = vshrl.u32 %v567, 7
      %v569 = vsub.s32 1, %v568
      %v570 = vrot.slane %v448, %v569
      %v571 = vlaneseq
      %v572 = vshrl.u32 %v571, 7
      %v573 = vsub.s32 0, %v572
      %v574 = vrot.slane %v450, %v573
      %v575 = vlaneseq
      %v576 = vshrl.u32 %v575, 7
      %v577 = vsub.s32 1, %v576
      %v578 = vrot.slane %v450, %v577
      %v611 = vmul.f32 %v454, %v283
      %v612 = vmul.f32 %v458, %v284
      %v613 = vmul.f32 %v454, %v285
      %v614 = vmul.f32 %v458, %v286
      %v615 = vmul.f32 %v462, %v283
      %v616 = vmul.f32 %v466, %v284
      %v617 = vmul.f32 %v462, %v285
      %v618 = vmul.f32 %v466, %v286
      %v619 = vmul.f32 %v470, %v283
      %v620 = vmul.f32 %v474, %v284
      %v621 = vmul.f32 %v470, %v285
      %v622 = vmul.f32 %v474, %v286
      %v623 = vmul.f32 %v478, %v283
      %v624 = vmul.f32 %v482, %v284
      %v625 = vmul.f32 %v478, %v285
      %v626 = vmul.f32 %v482, %v286
      %v627 = vmul.f32 %v486, %v283
      %v628 = vmul.f32 %v490, %v284
      %v629 = vmul.f32 %v486, %v285
      %v630 = vmul.f32 %v490, %v286
      %v631 = vmul.f32 %v494, %v283
      %v632 = vmul.f32 %v498, %v284
      %v633 = vmul.f32 %v494, %v285
      %v634 = vmul.f32 %v498, %v286
      %v635 = vmul.f32 %v502, %v283
      %v636 = vmul.f32 %v506, %v284
      %v637 = vmul.f32 %v502, %v285
      %v638 = vmul.f32 %v506, %v286
      %v639 = vmul.f32 %v510, %v283
      %v640 = vmul.f32 %v514, %v284
      %v641 = vmul.f32 %v510, %v285
      %v642 = vmul.f32 %v514, %v286
      %v643 = vmul.f32 %v518, %v283
      %v644 = vmul.f32 %v522, %v284
      %v645 = vmul.f32 %v518, %v285
      %v646 = vmul.f32 %v522, %v286
      %v647 = vmul.f32 %v526, %v283
      %v648 = vmul.f32 %v530, %v284
      %v649 = vmul.f32 %v526, %v285
      %v650 = vmul.f32 %v530, %v286
      %v651 = vmul.f32 %v534, %v283
      %v652 = vmul.f32 %v538, %v284
      %v653 = vmul.f32 %v534, %v285
      %v654 = vmul.f32 %v538, %v286
      %v655 = vmul.f32 %v542, %v283
      %v656 = vmul.f32 %v546, %v284
      %v657 = vmul.f32 %v542, %v285
      %v658 = vmul.f32 %v546, %v286
      %v659 = vmul.f32 %v550, %v283
      %v660 = vmul.f32 %v554, %v284
      %v661 = vmul.f32 %v550, %v285
      %v662 = vmul.f32 %v554, %v286
      %v663 = vmul.f32 %v558, %v283
      %v664 = vmul.f32 %v562, %v284
      %v665 = vmul.f32 %v558, %v285
      %v666 = vmul.f32 %v562, %v286
      %v667 = vmul.f32 %v566, %v283
      %v668 = vmul.f32 %v570, %v284
      %v669 = vmul.f32 %v566, %v285
      %v670 = vmul.f32 %v570, %v286
      %v671 = vmul.f32 %v574, %v283
      %v672 = vmul.f32 %v578, %v284
      %v673 = vmul.f32 %v574, %v285
      %v674 = vmul.f32 %v578, %v286
      %v675 = vld [vmem:[#allocation2] sm:$0xff]
      %v677 = vcombine.high %v675, %v675
      %679 = vmatprep.subr.mxu0 %v642
      %680 = vmatpush1.msra.mxu0 %v641
      %681 = vmatprep.subr.mxu0 %v640
      %682 = vmatpush1.msra.mxu0 %v639
      %683 = vmatprep.subr.mxu0 %v638
      %684 = vmatpush1.msra.mxu0 %v637
      %685 = vmatprep.subr.mxu0 %v636
      %686 = vmatpush1.msra.mxu0 %v635
      %687 = vmatprep.subr.mxu0 %v634
      %688 = vmatpush1.msra.mxu0 %v633
      %689 = vmatprep.subr.mxu0 %v632
      %690 = vmatpush1.msra.mxu0 %v631
      %691 = vmatprep.subr.mxu0 %v630
      %692 = vmatpush1.msra.mxu0 %v629
      %693 = vmatprep.subr.mxu0 %v628
      %694 = vmatpush1.msra.mxu0 %v627
      %695 = vmatprep.subr.mxu0 %v626
      %696 = vmatpush1.msra.mxu0 %v625
      %697 = vmatprep.subr.mxu0 %v624
      %698 = vmatpush1.msra.mxu0 %v623
      %699 = vmatprep.subr.mxu0 %v622
      %700 = vmatpush1.msra.mxu0 %v621
      %701 = vmatprep.subr.mxu0 %v620
      %702 = vmatpush1.msra.mxu0 %v619
      %703 = vmatprep.subr.mxu0 %v618
      %704 = vmatpush1.msra.mxu0 %v617
      %705 = vmatprep.subr.mxu0 %v616
      %706 = vmatpush1.msra.mxu0 %v615
      %707 = vmatprep.subr.mxu0 %v614
      %708 = vmatpush1.msra.mxu0 %v613
      %709 = vmatprep.subr.mxu0 %v612
      %710 = vmatpush1.msra.mxu0 %v611
      %711 = vmatprep.subr.mxu0 %v674
      %712 = vmatpush2.msra.mxu0 %v673
      %713 = vmatprep.subr.mxu0 %v672
      %714 = vmatpush2.msra.mxu0 %v671
      %715 = vmatprep.subr.mxu0 %v670
      %716 = vmatpush2.msra.mxu0 %v669
      %717 = vmatprep.subr.mxu0 %v668
      %718 = vmatpush2.msra.mxu0 %v667
      %719 = vmatprep.subr.mxu0 %v666
      %720 = vmatpush2.msra.mxu0 %v665
      %721 = vmatprep.subr.mxu0 %v664
      %722 = vmatpush2.msra.mxu0 %v663
      %723 = vmatprep.subr.mxu0 %v662
      %724 = vmatpush2.msra.mxu0 %v661
      %725 = vmatprep.subr.mxu0 %v660
      %726 = vmatpush2.msra.mxu0 %v659
      %727 = vmatprep.subr.mxu0 %v658
      %728 = vmatpush2.msra.mxu0 %v657
      %729 = vmatprep.subr.mxu0 %v656
      %730 = vmatpush2.msra.mxu0 %v655
      %731 = vmatprep.subr.mxu0 %v654
      %732 = vmatpush2.msra.mxu0 %v653
      %733 = vmatprep.subr.mxu0 %v652
      %734 = vmatpush2.msra.mxu0 %v651
      %735 = vmatprep.subr.mxu0 %v650
      %736 = vmatpush2.msra.mxu0 %v649
      %737 = vmatprep.subr.mxu0 %v648
      %738 = vmatpush2.msra.mxu0 %v647
      %739 = vmatprep.subr.mxu0 %v646
      %740 = vmatpush2.msra.mxu0 %v645
      %741 = vmatprep.subr.mxu0 %v644
      %742 = vmatpush2.msra.mxu0 %v643
      %743 = vmatprep.mubr.f32.mxu0 %v677
      %744 = vmatmul.mubr.f32.gmra.mxu0 %v675
      %v745 = vpop.f32.mrf.mxu0
      %v746 = vadd.f32 0.0, %v745
      %v747 = vpop.f32.mrf.mxu0
      %v748 = vadd.f32 0.0, %v747
      %749 = vdwg.mxu0
      %v752 = vcombine.low %v746, %v748
      %754 = vst [vmem:[%s155] sm:$0xff] %v752
      %s755 = smul.u32 2, %s18
      %p756 = scmp.lt.s32.totalorder %s17, 1
      %s757 = scalar_select %p756, %s17, 1
      %p758 = scmp.lt.s32.totalorder %s755, 1
      %s759 = scalar_select %p758, %s755, 1
      %s760 = smul.addr %s757, 2
      %s761 = sadd.s32 %s759, %s760
      %s762 = smul.addr %s761, 4
      %s763 = scalar_lea.vmem %s2, %s762
      // Predicated region
      $region63: #{pallas_index.1} parent=23 // pred_check
        %p764 = pneg %p73
      $region64: #{pallas_index.1} parent=23 // pred_check_branch
        %766 = sbr.rel (%p764) target = $region66
      $region65: #{pallas_index.1} parent=23 // pred_region
        %s767 = smul.u32 2, %s18
      $region66: #{pallas_index.1} parent=23 // pred_fallthru
        _
    $region24: #{pallas_index.1} parent=5 // pred_fallthru
      _
    %p768 = scmp.le.s32.totalorder 2, %s8
    // Predicated region
    $region67: #{pallas_index.1} parent=5 // pred_check
      %p769 = pneg %p768
    $region68: #{pallas_index.1} parent=5 // pred_check_branch
      %771 = sbr.rel (%p769) target = $region70
    $region69: #{pallas_index.1} parent=5 // pred_region
      %s772 = ssub.s32 %s8, 2
      // Predicated region
      $region71: #{pallas_index.1} parent=69 // pred_check
        %p773 = pneg %p79
      $region72: #{pallas_index.1} parent=69 // pred_check_branch
        %775 = sbr.rel (%p773) target = $region74
      $region73: #{pallas_index.1} parent=69 // pred_region
        %s776 = smul.u32 2, %s20
        %p777 = scmp.lt.s32.totalorder %s19, 1
        %s778 = scalar_select %p777, %s19, 1
        %p779 = scmp.lt.s32.totalorder %s776, 1
        %s780 = scalar_select %p779, %s776, 1
        %s781 = smul.addr %s778, 2
        %s782 = sadd.s32 %s780, %s781
        %s783 = smul.addr %s782, 4
        %s784 = scalar_lea.vmem %s2, %s783
      $region74: #{pallas_index.1} parent=69 // pred_fallthru
        _
    $region70: #{pallas_index.1} parent=5 // pred_fallthru
      _
  $region6: #{pallas_index.1} parent=0 // loop_footer
    %s12 = sadd.s32 1, %s8
  $region7: #{pallas_index.1} parent=0 // loop_footer_branch
    %7 = sbr.rel target = $region3
  $region8: #{pallas_index.1} parent=0 // loop_exit
    _
  %785 = vsyncmov [#allocation3]
  %s786 = vpop.sfrf %785
  %p787 = scmp.eq.s32.totalorder %s786, 0
  %p788 = pneg %p787
  %790 = shalt.err (%p788)

</llo_original>
